<compile_context>
chip_gen: v7x
topology: tpu7x:2x2x1
jax: 0.10.0
libtpu: 0.0.40
codegen_flags: <defaults>
</compile_context>

<pallas_src>
import jax
import jax.numpy as jnp
from jax import lax
from jax.experimental import pallas as pl
from jax.experimental.pallas import tpu as pltpu


def _round_up(n, m):
    return ((n + m - 1) // m) * m


def _disc_kernel(xs_ref, xa_ref, xl_ref,
                 w1s_ref, w1a_ref, w1l_ref, b1_ref,
                 w2_ref, b2_ref, w3t_ref, b3_ref, out_ref):
    bf16 = jnp.bfloat16

    # Fused layer 1: h = relu([s, a, lp] @ W1 + b1) == [d1 | d2], built from
    # three partial matmuls against the row-blocks of the fused W1.
    acc = jnp.dot(xs_ref[...].astype(bf16), w1s_ref[...],
                  preferred_element_type=jnp.float32)
    acc = acc + jnp.dot(xa_ref[...].astype(bf16), w1a_ref[...],
                        preferred_element_type=jnp.float32)
    acc = acc + jnp.dot(xl_ref[...].astype(bf16), w1l_ref[...],
                        preferred_element_type=jnp.float32)
    h = jnp.maximum(acc + b1_ref[...], 0.0).astype(bf16)        # [tb, 256] bf16

    # Layer 2: d = relu(h @ W2 + b2)
    d = jnp.dot(h, w2_ref[...], preferred_element_type=jnp.float32)
    d = jnp.maximum(d + b2_ref[...], 0.0).astype(bf16)          # [tb, 256] bf16

    # Layer 3, emitted transposed & lane-dense over the batch:
    #   logit[0, j] = sum_k w3[k, 0] * d[j, k]   ->  [1, tb]
    logit = lax.dot_general(w3t_ref[...], d,
                            dimension_numbers=(((1,), (1,)), ((), ())),
                            preferred_element_type=jnp.float32)  # [1, tb]
    logit = logit + b3_ref[...]                                  # b3 is [1, 1]
    out_ref[0] = jnp.clip(jax.nn.sigmoid(logit), 0.1, 0.9)       # [1, tb] f32


def discriminator_forward(state, action, log_pi, params, *, tile_b=1024):
    """Pallas forward.  state: [B, S], action/log_pi: [B, A].  Returns [B, 1]."""
    B, S = state.shape
    A = action.shape[1]

    # Batch tiling: multiples of 16 (bf16 sublane packing).  If the whole
    # batch would fit in one tile, halve the tile so the grid has >= 2 steps
    # and "parallel" semantics can use both v7x TensorCores.
    b16 = _round_up(B, 16)
    tb = min(tile_b, b16)
    if b16 >= 32 and b16 // tb < 2:
        tb = _round_up(b16 // 2, 16)
    b_pad = _round_up(B, tb)
    n_tiles = b_pad // tb

    def pad_b(x):
        if x.shape[0] == b_pad:
            return x
        return jnp.pad(x, ((0, b_pad - x.shape[0]), (0, 0)))

    state, action, log_pi = pad_b(state), pad_b(action), pad_b(log_pi)

    w1s, w1a, w1l = params["w1s"], params["w1a"], params["w1l"]
    b1, w2, b2 = params["b1"], params["w2"], params["b2"]
    w3t, b3 = params["w3t"], params["b3"]

    const = lambda i: (0, 0)   # weights / biases stay resident across steps

    flops = 2 * b_pad * ((S + 2 * A) * 256 + 256 * 256 + 256)
    bytes_accessed = (b_pad * (S + 2 * A) * 4
                      + 2 * (w1s.size + w1a.size + w1l.size + w2.size + w3t.size)
                      + 4 * (b1.size + b2.size + b3.size)
                      + b_pad * 4)

    out = pl.pallas_call(
        _disc_kernel,
        out_shape=jax.ShapeDtypeStruct((n_tiles, 1, tb), jnp.float32),
        grid=(n_tiles,),
        in_specs=[
            pl.BlockSpec((tb, S), lambda i: (i, 0)),
            pl.BlockSpec((tb, A), lambda i: (i, 0)),
            pl.BlockSpec((tb, A), lambda i: (i, 0)),
            pl.BlockSpec(w1s.shape, const),
            pl.BlockSpec(w1a.shape, const),
            pl.BlockSpec(w1l.shape, const),
            pl.BlockSpec(b1.shape, const),
            pl.BlockSpec(w2.shape, const),
            pl.BlockSpec(b2.shape, const),
            pl.BlockSpec(w3t.shape, const),
            pl.BlockSpec(b3.shape, const),
        ],
        out_specs=pl.BlockSpec((1, 1, tb), lambda i: (i, 0, 0)),
        compiler_params=pltpu.CompilerParams(
            dimension_semantics=("parallel",)),
        cost_estimate=pl.CostEstimate(
            flops=flops, transcendentals=b_pad, bytes_accessed=bytes_accessed),
    )(state, action, log_pi, w1s, w1a, w1l, b1, w2, b2, w3t, b3)

    # Contiguous reshape + trim (no strided slice kernel).
    return out.reshape(-1)[:B].reshape(B, 1)


def init_params(key, state_dim, action_dim):
    """Raw params matching nn.Linear shapes (weights stored transposed)."""
    def linear(key, fan_in, fan_out):
        kw, kb = jax.random.split(key)
        bound = 1.0 / jnp.sqrt(fan_in)
        w = jax.random.uniform(kw, (fan_in, fan_out), jnp.float32, -bound, bound)
        b = jax.random.uniform(kb, (1, fan_out), jnp.float32, -bound, bound)
        return w, b

    k1, k2, k3, k4 = jax.random.split(key, 4)
    w11, b11 = linear(k1, state_dim + action_dim, 128)   # fc1_1
    w12, b12 = linear(k2, action_dim, 128)               # fc1_2
    w2, b2 = linear(k3, 256, 256)                        # fc2
    w3, b3 = linear(k4, 256, 1)                          # fc3
    return {"w11": w11, "b11": b11, "w12": w12, "b12": b12,
            "w2": w2, "b2": b2, "w3": w3, "b3": b3}


def prepare_params(raw, state_dim, action_dim, dtype=jnp.bfloat16):
    """Build the fused / split kernel parameters from nn.Linear-style params."""
    S, A = state_dim, action_dim

    # Row-blocks of the fused layer-1 weight so that
    #   s @ w1s + a @ w1a + lp @ w1l == [ [s,a] @ w11 | lp @ w12 ].
    w1s = jnp.zeros((S, 256), jnp.float32).at[:, :128].set(raw["w11"][:S])
    w1a = jnp.zeros((A, 256), jnp.float32).at[:, :128].set(raw["w11"][S:])
    w1l = jnp.zeros((A, 256), jnp.float32).at[:, 128:].set(raw["w12"])
    b1 = jnp.concatenate([raw["b11"], raw["b12"]], axis=1)      # [1, 256]

    w3t = raw["w3"].T                                            # [1, 256]
    b3 = raw["b3"]                                               # [1, 1]

    return {
        "w1s": w1s.astype(dtype), "w1a": w1a.astype(dtype),
        "w1l": w1l.astype(dtype), "b1": b1,                      # biases f32
        "w2": raw["w2"].astype(dtype), "b2": raw["b2"],
        "w3t": w3t.astype(dtype), "b3": b3,
    }


def _reference_forward(state, action, log_pi, raw):
    """Plain-JAX f32 reference mirroring the PyTorch module."""
    sa = jnp.concatenate([state, action], axis=1)
    d1 = jax.nn.relu(sa @ raw["w11"] + raw["b11"])
    d2 = jax.nn.relu(log_pi @ raw["w12"] + raw["b12"])
    d = jax.nn.relu(jnp.concatenate([d1, d2], axis=1) @ raw["w2"] + raw["b2"])
    d = jax.nn.sigmoid(d @ raw["w3"] + raw["b3"])
    return jnp.clip(d, 0.1, 0.9)


if __name__ == "__main__":
    state_dim, action_dim = 12, 4

    key = jax.random.PRNGKey(0)
    kp, ks, ka, kl = jax.random.split(key, 4)
    raw_params = init_params(kp, state_dim, action_dim)
    params = prepare_params(raw_params, state_dim, action_dim)

    ok = True
    for batch in (8, 40):   # grid=1 path and multi-tile / padded path
        kb = jax.random.fold_in(ks, batch)
        state = jax.random.normal(jax.random.fold_in(ks, batch),
                                  (batch, state_dim), jnp.float32)
        action = jax.random.normal(jax.random.fold_in(ka, batch),
                                   (batch, action_dim), jnp.float32)
        log_pi = jax.random.normal(jax.random.fold_in(kl, batch),
                                   (batch, action_dim), jnp.float32)

        out = discriminator_forward(state, action, log_pi, params)
        out = jax.block_until_ready(out)

        ref = _reference_forward(state, action, log_pi, raw_params)
        assert out.shape == (batch, 1)
        # bf16 matmul operands -> relaxed tolerance vs the f32 reference.
        assert jnp.allclose(out, ref, atol=5e-2, rtol=5e-2), (
            f"batch={batch}: max abs diff {jnp.max(jnp.abs(out - ref))}")

    if ok:
        print("KERNEL_OK")
</pallas_src>

<mosaic_0001>
module attributes {stable_mosaic.version = 11 : i64} {
  func.func @_disc_kernel(%arg0: i32, %arg1: memref<16x12xf32, #tpu.memory_space<vmem>>, %arg2: memref<16x4xf32, #tpu.memory_space<vmem>>, %arg3: memref<16x4xf32, #tpu.memory_space<vmem>>, %arg4: memref<12x256xbf16, #tpu.memory_space<vmem>>, %arg5: memref<4x256xbf16, #tpu.memory_space<vmem>>, %arg6: memref<4x256xbf16, #tpu.memory_space<vmem>>, %arg7: memref<1x256xf32, #tpu.memory_space<vmem>>, %arg8: memref<256x256xbf16, #tpu.memory_space<vmem>>, %arg9: memref<1x256xf32, #tpu.memory_space<vmem>>, %arg10: memref<1x256xbf16, #tpu.memory_space<vmem>>, %arg11: memref<1x1xf32, #tpu.memory_space<vmem>>, %arg12: memref<1x1x16xf32, #tpu.memory_space<vmem>>) attributes {dimension_semantics = [#tpu.dimension_semantics<parallel>], iteration_bounds = array<i64: 1>, scalar_prefetch = 0 : i64, scratch_operands = 0 : i64, tpu.core_type = #tpu.core_type<tc>, window_params = [{transform_indices = @transform_0, window_bounds = array<i64: 16, 12>}, {transform_indices = @transform_1, window_bounds = array<i64: 16, 4>}, {transform_indices = @transform_2, window_bounds = array<i64: 16, 4>}, {pipeline_mode = #tpu.pipeline_mode<synchronous>, transform_indices = @transform_3, window_bounds = array<i64: 12, 256>}, {pipeline_mode = #tpu.pipeline_mode<synchronous>, transform_indices = @transform_4, window_bounds = array<i64: 4, 256>}, {pipeline_mode = #tpu.pipeline_mode<synchronous>, transform_indices = @transform_5, window_bounds = array<i64: 4, 256>}, {pipeline_mode = #tpu.pipeline_mode<synchronous>, transform_indices = @transform_6, window_bounds = array<i64: 1, 256>}, {pipeline_mode = #tpu.pipeline_mode<synchronous>, transform_indices = @transform_7, window_bounds = array<i64: 256, 256>}, {pipeline_mode = #tpu.pipeline_mode<synchronous>, transform_indices = @transform_8, window_bounds = array<i64: 1, 256>}, {pipeline_mode = #tpu.pipeline_mode<synchronous>, transform_indices = @transform_9, window_bounds = array<i64: 1, 256>}, {pipeline_mode = #tpu.pipeline_mode<synchronous>, transform_indices = @transform_10, window_bounds = array<i64: 1, 1>}, {transform_indices = @transform_11, window_bounds = array<i64: 1, 1, 16>}]} {
    %c0 = arith.constant 0 : index
    %c0_0 = arith.constant 0 : index
    %0 = vector.load %arg1[%c0, %c0_0] : memref<16x12xf32, #tpu.memory_space<vmem>>, vector<16x12xf32>
    %1 = arith.truncf %0 : vector<16x12xf32> to vector<16x12xbf16>
    %c0_1 = arith.constant 0 : index
    %c0_2 = arith.constant 0 : index
    %2 = vector.load %arg4[%c0_1, %c0_2] : memref<12x256xbf16, #tpu.memory_space<vmem>>, vector<12x256xbf16>
    %cst = arith.constant dense<0.000000e+00> : vector<16x256xf32>
    %3 = tpu.matmul %1, %2, %cst {dimension_numbers = #tpu.dot_dimension_numbers<[1], [0], [0], [1], [0, 0, 1, 1], [], []>} : vector<16x12xbf16>, vector<12x256xbf16>, vector<16x256xf32> -> vector<16x256xf32>
    %c0_3 = arith.constant 0 : index
    %c0_4 = arith.constant 0 : index
    %4 = vector.load %arg2[%c0_3, %c0_4] : memref<16x4xf32, #tpu.memory_space<vmem>>, vector<16x4xf32>
    %5 = arith.truncf %4 : vector<16x4xf32> to vector<16x4xbf16>
    %c0_5 = arith.constant 0 : index
    %c0_6 = arith.constant 0 : index
    %6 = vector.load %arg5[%c0_5, %c0_6] : memref<4x256xbf16, #tpu.memory_space<vmem>>, vector<4x256xbf16>
    %cst_7 = arith.constant dense<0.000000e+00> : vector<16x256xf32>
    %7 = tpu.matmul %5, %6, %cst_7 {dimension_numbers = #tpu.dot_dimension_numbers<[1], [0], [0], [1], [0, 0, 1, 1], [], []>} : vector<16x4xbf16>, vector<4x256xbf16>, vector<16x256xf32> -> vector<16x256xf32>
    %8 = arith.addf %3, %7 : vector<16x256xf32>
    %c0_8 = arith.constant 0 : index
    %c0_9 = arith.constant 0 : index
    %9 = vector.load %arg3[%c0_8, %c0_9] : memref<16x4xf32, #tpu.memory_space<vmem>>, vector<16x4xf32>
    %10 = arith.truncf %9 : vector<16x4xf32> to vector<16x4xbf16>
    %c0_10 = arith.constant 0 : index
    %c0_11 = arith.constant 0 : index
    %11 = vector.load %arg6[%c0_10, %c0_11] : memref<4x256xbf16, #tpu.memory_space<vmem>>, vector<4x256xbf16>
    %cst_12 = arith.constant dense<0.000000e+00> : vector<16x256xf32>
    %12 = tpu.matmul %10, %11, %cst_12 {dimension_numbers = #tpu.dot_dimension_numbers<[1], [0], [0], [1], [0, 0, 1, 1], [], []>} : vector<16x4xbf16>, vector<4x256xbf16>, vector<16x256xf32> -> vector<16x256xf32>
    %13 = arith.addf %8, %12 : vector<16x256xf32>
    %c0_13 = arith.constant 0 : index
    %c0_14 = arith.constant 0 : index
    %14 = vector.load %arg7[%c0_13, %c0_14] : memref<1x256xf32, #tpu.memory_space<vmem>>, vector<1x256xf32>
    %15 = vector.broadcast %14 : vector<1x256xf32> to vector<16x256xf32>
    %16 = arith.addf %13, %15 : vector<16x256xf32>
    %cst_15 = arith.constant 0.000000e+00 : f32
    %17 = vector.broadcast %cst_15 : f32 to vector<16x256xf32>
    %18 = arith.maximumf %16, %17 : vector<16x256xf32>
    %19 = arith.truncf %18 : vector<16x256xf32> to vector<16x256xbf16>
    %c0_16 = arith.constant 0 : index
    %c0_17 = arith.constant 0 : index
    %20 = vector.load %arg8[%c0_16, %c0_17] : memref<256x256xbf16, #tpu.memory_space<vmem>>, vector<256x256xbf16>
    %cst_18 = arith.constant dense<0.000000e+00> : vector<16x256xf32>
    %21 = tpu.matmul %19, %20, %cst_18 {dimension_numbers = #tpu.dot_dimension_numbers<[1], [0], [0], [1], [0, 0, 1, 1], [], []>} : vector<16x256xbf16>, vector<256x256xbf16>, vector<16x256xf32> -> vector<16x256xf32>
    %c0_19 = arith.constant 0 : index
    %c0_20 = arith.constant 0 : index
    %22 = vector.load %arg9[%c0_19, %c0_20] : memref<1x256xf32, #tpu.memory_space<vmem>>, vector<1x256xf32>
    %23 = vector.broadcast %22 : vector<1x256xf32> to vector<16x256xf32>
    %24 = arith.addf %21, %23 : vector<16x256xf32>
    %cst_21 = arith.constant 0.000000e+00 : f32
    %25 = vector.broadcast %cst_21 : f32 to vector<16x256xf32>
    %26 = arith.maximumf %24, %25 : vector<16x256xf32>
    %27 = arith.truncf %26 : vector<16x256xf32> to vector<16x256xbf16>
    %c0_22 = arith.constant 0 : index
    %c0_23 = arith.constant 0 : index
    %28 = vector.load %arg10[%c0_22, %c0_23] : memref<1x256xbf16, #tpu.memory_space<vmem>>, vector<1x256xbf16>
    %cst_24 = arith.constant dense<0.000000e+00> : vector<1x16xf32>
    %29 = tpu.matmul %28, %27, %cst_24 {dimension_numbers = #tpu.dot_dimension_numbers<[1], [1], [0], [0], [0, 0, 1, 0], [], []>} : vector<1x256xbf16>, vector<16x256xbf16>, vector<1x16xf32> -> vector<1x16xf32>
    %c0_25 = arith.constant 0 : index
    %c0_26 = arith.constant 0 : index
    %30 = vector.load %arg11[%c0_25, %c0_26] : memref<1x1xf32, #tpu.memory_space<vmem>>, vector<1x1xf32>
    %31 = vector.broadcast %30 : vector<1x1xf32> to vector<1x16xf32>
    %32 = arith.addf %29, %31 : vector<1x16xf32>
    %33 = arith.negf %32 : vector<1x16xf32>
    %34 = math.exp %33 : vector<1x16xf32>
    %cst_27 = arith.constant 1.000000e+00 : f32
    %35 = vector.broadcast %cst_27 : f32 to vector<1x16xf32>
    %36 = arith.addf %35, %34 : vector<1x16xf32>
    %37 = arith.divf %35, %36 : vector<1x16xf32>
    %cst_28 = arith.constant 1.000000e-01 : f32
    %cst_29 = arith.constant 0.899999976 : f32
    %38 = vector.broadcast %cst_28 : f32 to vector<1x16xf32>
    %39 = arith.maximumf %38, %37 : vector<1x16xf32>
    %40 = vector.broadcast %cst_29 : f32 to vector<1x16xf32>
    %41 = arith.minimumf %40, %39 : vector<1x16xf32>
    %c0_30 = arith.constant 0 : index
    %c0_31 = arith.constant 0 : index
    %c0_32 = arith.constant 0 : index
    %42 = vector.load %arg12[%c0_30, %c0_31, %c0_32] : memref<1x1x16xf32, #tpu.memory_space<vmem>>, vector<1x1x16xf32>
    %43 = vector.shape_cast %42 : vector<1x1x16xf32> to vector<1x16xf32>
    %44 = vector.shape_cast %41 : vector<1x16xf32> to vector<1x1x16xf32>
    tpu.vector_store %arg12[%c0_30, %c0_31, %c0_32], %44 {strides = array<i32>} : memref<1x1x16xf32, #tpu.memory_space<vmem>>, vector<1x1x16xf32>,
    return
  }
  func.func @transform_0(%arg0: i32) -> (i32, i32) {
    %c0_i32 = arith.constant 0 : i32
    %c0_i32_0 = arith.constant 0 : i32
    return %arg0, %c0_i32 : i32, i32
  }
  func.func @transform_1(%arg0: i32) -> (i32, i32) {
    %c0_i32 = arith.constant 0 : i32
    %c0_i32_0 = arith.constant 0 : i32
    return %arg0, %c0_i32 : i32, i32
  }
  func.func @transform_2(%arg0: i32) -> (i32, i32) {
    %c0_i32 = arith.constant 0 : i32
    %c0_i32_0 = arith.constant 0 : i32
    return %arg0, %c0_i32 : i32, i32
  }
  func.func @transform_3(%arg0: i32) -> (i32, i32) {
    %c0_i32 = arith.constant 0 : i32
    %c0_i32_0 = arith.constant 0 : i32
    %c0_i32_1 = arith.constant 0 : i32
    return %c0_i32, %c0_i32_0 : i32, i32
  }
  func.func @transform_4(%arg0: i32) -> (i32, i32) {
    %c0_i32 = arith.constant 0 : i32
    %c0_i32_0 = arith.constant 0 : i32
    %c0_i32_1 = arith.constant 0 : i32
    return %c0_i32, %c0_i32_0 : i32, i32
  }
  func.func @transform_5(%arg0: i32) -> (i32, i32) {
    %c0_i32 = arith.constant 0 : i32
    %c0_i32_0 = arith.constant 0 : i32
    %c0_i32_1 = arith.constant 0 : i32
    return %c0_i32, %c0_i32_0 : i32, i32
  }
  func.func @transform_6(%arg0: i32) -> (i32, i32) {
    %c0_i32 = arith.constant 0 : i32
    %c0_i32_0 = arith.constant 0 : i32
    %c0_i32_1 = arith.constant 0 : i32
    return %c0_i32, %c0_i32_0 : i32, i32
  }
  func.func @transform_7(%arg0: i32) -> (i32, i32) {
    %c0_i32 = arith.constant 0 : i32
    %c0_i32_0 = arith.constant 0 : i32
    %c0_i32_1 = arith.constant 0 : i32
    return %c0_i32, %c0_i32_0 : i32, i32
  }
  func.func @transform_8(%arg0: i32) -> (i32, i32) {
    %c0_i32 = arith.constant 0 : i32
    %c0_i32_0 = arith.constant 0 : i32
    %c0_i32_1 = arith.constant 0 : i32
    return %c0_i32, %c0_i32_0 : i32, i32
  }
  func.func @transform_9(%arg0: i32) -> (i32, i32) {
    %c0_i32 = arith.constant 0 : i32
    %c0_i32_0 = arith.constant 0 : i32
    %c0_i32_1 = arith.constant 0 : i32
    return %c0_i32, %c0_i32_0 : i32, i32
  }
  func.func @transform_10(%arg0: i32) -> (i32, i32) {
    %c0_i32 = arith.constant 0 : i32
    %c0_i32_0 = arith.constant 0 : i32
    %c0_i32_1 = arith.constant 0 : i32
    return %c0_i32, %c0_i32_0 : i32, i32
  }
  func.func @transform_11(%arg0: i32) -> (i32, i32, i32) {
    %c0_i32 = arith.constant 0 : i32
    %c0_i32_0 = arith.constant 0 : i32
    %c0_i32_1 = arith.constant 0 : i32
    return %arg0, %c0_i32, %c0_i32_0 : i32, i32, i32
  }
}

</mosaic_0001>

<llo_original>
// kernel: tpu_custom_call.1
$region0: #{tpu_custom_call.1}
  #allocation0 [shape = 'u32[]', space=smem, size = 0x4, offset = 0x4, fixed_abs, tag = 'smem constant byte address 0x4 - core index']
  #allocation1 [shape = 'u32[144,128]{1,0:T(1,128)}', space=vmem, size = 0x12000, scoped, tag = 'internal scratch']
  #allocation2 [shape = 'f32[1,1]{1,0:T(1,128)S(1)}', space=vmem, size = 0x200, scoped, tag = 'scoped memory for tpu_custom_call.1']
  %s0 = inlined_call_operand.vmem [shape: f32[16,12], index: 0, kind: input, shape index: {}]
  %s1 = inlined_call_operand.vmem [shape: f32[16,4], index: 1, kind: input, shape index: {}]
  %s2 = inlined_call_operand.vmem [shape: f32[16,4], index: 2, kind: input, shape index: {}]
  %s3 = inlined_call_operand.vmem [shape: bf16[12,256], index: 3, kind: input, shape index: {}]
  %s4 = inlined_call_operand.vmem [shape: bf16[4,256], index: 4, kind: input, shape index: {}]
  %s5 = inlined_call_operand.vmem [shape: bf16[4,256], index: 5, kind: input, shape index: {}]
  %s6 = inlined_call_operand.vmem [shape: f32[1,256], index: 6, kind: input, shape index: {}]
  %s7 = inlined_call_operand.hbm [shape: bf16[256,256], index: 7, kind: input, shape index: {}]
  %s8 = inlined_call_operand.vmem [shape: f32[1,256], index: 8, kind: input, shape index: {}]
  %s9 = inlined_call_operand.vmem [shape: bf16[1,256], index: 9, kind: input, shape index: {}]
  %s10 = inlined_call_operand.<no memory space> [shape: f32[1,1], index: 10, kind: input, shape index: {}]
  %s11 = inlined_call_operand.hbm [shape: f32[1,1,16], index: 11, kind: output, shape index: {}]
  %s12 = sld [smem:[#allocation0]]
  $region58: #{tpu_custom_call.1} parent=0
    _
  %s14 = ssub.s32 1, %s12
  %s15 = scalar_select 0, %s14, %s12
  %v16 = vstv %s10
  %17 = vst [vmem:[#allocation2] sm:$0x1] %v16
  $region1: #{tpu_custom_call.1} parent=0
    #allocation3 [shape = 'u8[131072]{0}', space=vmem, size = 0x20000, scoped, tag = 'input window, operand 7, single buffered']
    #allocation4 [shape = 's32[1]{0}', space=sflag, size = 0x4, scoped, tag = 'scoped memory for tpu_custom_call.1']
    #allocation5 [shape = 's32[1]{0}', space=sflag, size = 0x4, scoped, tag = 'scoped memory for tpu_custom_call.1']
    #allocation6 [shape = 'u8[512]{0}', space=vmem, size = 0x400, scoped, tag = 'output window, operand 0, single buffered']
    %18 = vsyncpa [#allocation4], 0
    %19 = vsyncpa [#allocation5], 0
    // Predicated region
    $region2: #{tpu_custom_call.1} parent=1 // pred_check
      _
    $region3: #{tpu_custom_call.1} parent=1 // pred_check_branch
      %21 = sbr.rel (0) target = $region5
    $region4: #{tpu_custom_call.1} parent=1 // pred_region
      _
    $region5: #{tpu_custom_call.1} parent=1 // pred_fallthru
      _
    // Predicated region
    $region6: #{tpu_custom_call.1} parent=1 // pred_check
      _
    $region7: #{tpu_custom_call.1} parent=1 // pred_check_branch
      %23 = sbr.rel (0) target = $region9
    $region8: #{tpu_custom_call.1} parent=1 // pred_region
      _
    $region9: #{tpu_custom_call.1} parent=1 // pred_fallthru
      _
    // Predicated region
    $region10: #{tpu_custom_call.1} parent=1 // pred_check
      _
    $region11: #{tpu_custom_call.1} parent=1 // pred_check_branch
      %25 = sbr.rel (0) target = $region13
    $region12: #{tpu_custom_call.1} parent=1 // pred_region
      _
    $region13: #{tpu_custom_call.1} parent=1 // pred_fallthru
      _
    // Predicated region
    $region14: #{tpu_custom_call.1} parent=1 // pred_check
      _
    $region15: #{tpu_custom_call.1} parent=1 // pred_check_branch
      %27 = sbr.rel (0) target = $region17
    $region16: #{tpu_custom_call.1} parent=1 // pred_region
      _
    $region17: #{tpu_custom_call.1} parent=1 // pred_fallthru
      _
    // Predicated region
    $region18: #{tpu_custom_call.1} parent=1 // pred_check
      _
    $region19: #{tpu_custom_call.1} parent=1 // pred_check_branch
      %29 = sbr.rel (0) target = $region21
    $region20: #{tpu_custom_call.1} parent=1 // pred_region
      _
    $region21: #{tpu_custom_call.1} parent=1 // pred_fallthru
      _
    // Predicated region
    $region22: #{tpu_custom_call.1} parent=1 // pred_check
      _
    $region23: #{tpu_custom_call.1} parent=1 // pred_check_branch
      %31 = sbr.rel (0) target = $region25
    $region24: #{tpu_custom_call.1} parent=1 // pred_region
      _
    $region25: #{tpu_custom_call.1} parent=1 // pred_fallthru
      _
    // Predicated region
    $region26: #{tpu_custom_call.1} parent=1 // pred_check
      _
    $region27: #{tpu_custom_call.1} parent=1 // pred_check_branch
      %33 = sbr.rel (0) target = $region29
    $region28: #{tpu_custom_call.1} parent=1 // pred_region
      _
    $region29: #{tpu_custom_call.1} parent=1 // pred_fallthru
      _
    // Predicated region
    $region30: #{tpu_custom_call.1} parent=1 // pred_check
      _
    $region31: #{tpu_custom_call.1} parent=1 // pred_check_branch
      %35 = sbr.rel (0) target = $region33
    $region32: #{tpu_custom_call.1} parent=1 // pred_region
      %s37 = ssub.s32 4096, 4096
      %38 = vsyncadd [#allocation4], %s37
      %s39 = sshll.u32 [#allocation3], 4
      %s40 = int_to_ptr.vmem [resolvable:$true] %s39
      %45 = dma.hbm_to_vmem [thread:$0]  %s7, 4096, %s40, [#allocation4], 128, 128, 8
    $region33: #{tpu_custom_call.1} parent=1 // pred_fallthru
      _
    // Predicated region
    $region34: #{tpu_custom_call.1} parent=1 // pred_check
      _
    $region35: #{tpu_custom_call.1} parent=1 // pred_check_branch
      %47 = sbr.rel (0) target = $region37
    $region36: #{tpu_custom_call.1} parent=1 // pred_region
      _
    $region37: #{tpu_custom_call.1} parent=1 // pred_fallthru
      _
    // Predicated region
    $region38: #{tpu_custom_call.1} parent=1 // pred_check
      _
    $region39: #{tpu_custom_call.1} parent=1 // pred_check_branch
      %49 = sbr.rel (0) target = $region41
    $region40: #{tpu_custom_call.1} parent=1 // pred_region
      _
    $region41: #{tpu_custom_call.1} parent=1 // pred_fallthru
      _
    // Predicated region
    $region42: #{tpu_custom_call.1} parent=1 // pred_check
      _
    $region43: #{tpu_custom_call.1} parent=1 // pred_check_branch
      %51 = sbr.rel (0) target = $region45
    $region44: #{tpu_custom_call.1} parent=1 // pred_region
      _
    $region45: #{tpu_custom_call.1} parent=1 // pred_fallthru
      _
    // Predicated region
    $region46: #{tpu_custom_call.1} parent=1 // pred_check
      _
    $region47: #{tpu_custom_call.1} parent=1 // pred_check_branch
      %53 = sbr.rel (0) target = $region49
    $region48: #{tpu_custom_call.1} parent=1 // pred_region
      %54 = dma.done [#allocation4], 4096
    $region49: #{tpu_custom_call.1} parent=1 // pred_fallthru
      _
    %v56 = vld [vmem:[%s0] sm:$0xff]
    %v57 = vld [vmem:[%s0 + $0x8] sm:$0xff]
    %v58 = vpack.c.bf16 %v57, %v56
    %v59 = vld [vmem:[%s3] sm:$0xff]
    %v60 = vld [vmem:[%s3 + $0x8] sm:$0x33]
    %v61 = vld [vmem:[%s1] sm:$0xff]
    %v62 = vld [vmem:[%s1 + $0x8] sm:$0xff]
    %v63 = vpack.c.bf16 %v62, %v61
    %v64 = vld [vmem:[%s4] sm:$0xf]
    %v67 = vunpack.c.l.s4 1983009808
    %v68 = vunpack.c.0.s8 %v67
    %v69 = vlaneseq
    %v70 = vshrl.u32 %v69, 7
    %v71 = vsub.s32 %v68, %v70
    %v72 = vrot.slane %v64, %v71
    %v73 = vcombine.high %v72, %v72
    %vm74 = vcmask 31744
    %v76 = vsel %vm74, %v63, 0
    %vm78 = vcmask 1041408
    %v80 = vsel %vm78, %v72, 0
    %v83 = vsel %vm78, %v73, 0
    %85 = vmatprep.subr.bf16.mxu0 %v83
    %86 = vmatpush1.bf16.msra.mxu0 %v80
    %87 = vmatprep.subr.bf16.mxu0 0
    %88 = vmatpush1.bf16.msra.mxu0 0
    %89 = vmatprep.subr.bf16.mxu0 0
    %90 = vmatpush1.bf16.msra.mxu0 0
    %91 = vmatprep.subr.bf16.mxu0 0
    %92 = vmatpush1.bf16.msra.mxu0 0
    %93 = vmatprep.subr.bf16.mxu0 0
    %94 = vmatpush1.bf16.msra.mxu0 0
    %95 = vmatprep.subr.bf16.mxu0 0
    %96 = vmatpush1.bf16.msra.mxu0 0
    %97 = vmatprep.subr.bf16.mxu0 0
    %98 = vmatpush1.bf16.msra.mxu0 0
    %99 = vmatprep.subr.bf16.mxu0 0
    %100 = vmatpush1.bf16.msra.mxu0 0
    %101 = vmatprep.subr.bf16.mxu0 0
    %102 = vmatpush1.bf16.msra.mxu0 0
    %103 = vmatprep.subr.bf16.mxu0 0
    %104 = vmatpush1.bf16.msra.mxu0 0
    %105 = vmatprep.subr.bf16.mxu0 0
    %106 = vmatpush1.bf16.msra.mxu0 0
    %107 = vmatprep.subr.bf16.mxu0 0
    %108 = vmatpush1.bf16.msra.mxu0 0
    %109 = vmatprep.subr.bf16.mxu0 0
    %110 = vmatpush1.bf16.msra.mxu0 0
    %111 = vmatprep.subr.bf16.mxu0 0
    %112 = vmatpush1.bf16.msra.mxu0 0
    %113 = vmatprep.subr.bf16.mxu0 0
    %114 = vmatpush1.bf16.msra.mxu0 0
    %115 = vmatprep.subr.bf16.mxu0 0
    %116 = vmatpush1.bf16.msra.mxu0 0
    %117 = vmatprep.mubr.bf16.mxu0 0
    %118 = vmatmul.mubr.bf16.gmra.mrb[0].mxu0 %v76
    %v119 = vpop.f32.mrb[0].mxu0
    %v120 = vadd.f32 0.0, %v119
    %v121 = vpop.f32.mrb[0].mxu0
    %v122 = vadd.f32 0.0, %v121
    %v123 = vpop.f32.mrb[0].mxu0
    %v124 = vadd.f32 0.0, %v123
    %v125 = vpop.f32.mrb[0].mxu0
    %v126 = vadd.f32 0.0, %v125
    %127 = vdwg.mxu0
    %v130 = vunpack.c.l.b16 %v59
    %v131 = vunpack.c.h.b16 %v59
    %v132 = vunpack.c.l.b16 %v60
    %v133 = vunpack.c.h.b16 %v60
    %v134 = vpack.c.b16 %v132, %v130
    %v135 = vpack.c.b16 %v133, %v131
    %vm136 = vcmask 97280
    %v138 = vsel %vm136, %v58, 0
    %vm140 = vcmask 1045504
    %v142 = vsel %vm140, %v134, 0
    %v145 = vsel %vm140, %v135, 0
    %147 = vmatprep.subr.bf16.mxu0 %v145
    %148 = vmatpush1.bf16.msra.mxu0 %v142
    %149 = vmatprep.subr.bf16.mxu0 0
    %150 = vmatpush1.bf16.msra.mxu0 0
    %151 = vmatprep.subr.bf16.mxu0 0
    %152 = vmatpush1.bf16.msra.mxu0 0
    %153 = vmatprep.subr.bf16.mxu0 0
    %154 = vmatpush1.bf16.msra.mxu0 0
    %155 = vmatprep.subr.bf16.mxu0 0
    %156 = vmatpush1.bf16.msra.mxu0 0
    %157 = vmatprep.subr.bf16.mxu0 0
    %158 = vmatpush1.bf16.msra.mxu0 0
    %159 = vmatprep.subr.bf16.mxu0 0
    %160 = vmatpush1.bf16.msra.mxu0 0
    %161 = vmatprep.subr.bf16.mxu0 0
    %162 = vmatpush1.bf16.msra.mxu0 0
    %163 = vmatprep.subr.bf16.mxu0 0
    %164 = vmatpush1.bf16.msra.mxu0 0
    %165 = vmatprep.subr.bf16.mxu0 0
    %166 = vmatpush1.bf16.msra.mxu0 0
    %167 = vmatprep.subr.bf16.mxu0 0
    %168 = vmatpush1.bf16.msra.mxu0 0
    %169 = vmatprep.subr.bf16.mxu0 0
    %170 = vmatpush1.bf16.msra.mxu0 0
    %171 = vmatprep.subr.bf16.mxu0 0
    %172 = vmatpush1.bf16.msra.mxu0 0
    %173 = vmatprep.subr.bf16.mxu0 0
    %174 = vmatpush1.bf16.msra.mxu0 0
    %175 = vmatprep.subr.bf16.mxu0 0
    %176 = vmatpush1.bf16.msra.mxu0 0
    %177 = vmatprep.subr.bf16.mxu0 0
    %178 = vmatpush1.bf16.msra.mxu0 0
    %179 = vmatprep.mubr.bf16.mxu0 0
    %180 = vmatmul.mubr.bf16.gmra.mrb[0].mxu0 %v138
    %v181 = vpop.f32.mrb[0].mxu0
    %v182 = vadd.f32 %v120, %v181
    %v183 = vpop.f32.mrb[0].mxu0
    %v184 = vadd.f32 %v122, %v183
    %v185 = vpop.f32.mrb[0].mxu0
    %v186 = vadd.f32 %v124, %v185
    %v187 = vpop.f32.mrb[0].mxu0
    %v188 = vadd.f32 %v126, %v187
    %189 = vdwg.mxu0
    %v190 = vld [vmem:[%s2] sm:$0xff]
    %v191 = vld [vmem:[%s2 + $0x8] sm:$0xff]
    %v192 = vpack.c.bf16 %v191, %v190
    %v193 = vld [vmem:[%s5] sm:$0xf]
    %v196 = vunpack.c.l.s4 1983009808
    %v197 = vunpack.c.0.s8 %v196
    %v198 = vlaneseq
    %v199 = vshrl.u32 %v198, 7
    %v200 = vsub.s32 %v197, %v199
    %v201 = vrot.slane %v193, %v200
    %v202 = vcombine.high %v201, %v201
    %v204 = vsel %vm74, %v192, 0
    %v207 = vsel %vm78, %v201, 0
    %v210 = vsel %vm78, %v202, 0
    %212 = vmatprep.subr.bf16.mxu0 %v210
    %213 = vmatpush1.bf16.msra.mxu0 %v207
    %214 = vmatprep.subr.bf16.mxu0 0
    %215 = vmatpush1.bf16.msra.mxu0 0
    %216 = vmatprep.subr.bf16.mxu0 0
    %217 = vmatpush1.bf16.msra.mxu0 0
    %218 = vmatprep.subr.bf16.mxu0 0
    %219 = vmatpush1.bf16.msra.mxu0 0
    %220 = vmatprep.subr.bf16.mxu0 0
    %221 = vmatpush1.bf16.msra.mxu0 0
    %222 = vmatprep.subr.bf16.mxu0 0
    %223 = vmatpush1.bf16.msra.mxu0 0
    %224 = vmatprep.subr.bf16.mxu0 0
    %225 = vmatpush1.bf16.msra.mxu0 0
    %226 = vmatprep.subr.bf16.mxu0 0
    %227 = vmatpush1.bf16.msra.mxu0 0
    %228 = vmatprep.subr.bf16.mxu0 0
    %229 = vmatpush1.bf16.msra.mxu0 0
    %230 = vmatprep.subr.bf16.mxu0 0
    %231 = vmatpush1.bf16.msra.mxu0 0
    %232 = vmatprep.subr.bf16.mxu0 0
    %233 = vmatpush1.bf16.msra.mxu0 0
    %234 = vmatprep.subr.bf16.mxu0 0
    %235 = vmatpush1.bf16.msra.mxu0 0
    %236 = vmatprep.subr.bf16.mxu0 0
    %237 = vmatpush1.bf16.msra.mxu0 0
    %238 = vmatprep.subr.bf16.mxu0 0
    %239 = vmatpush1.bf16.msra.mxu0 0
    %240 = vmatprep.subr.bf16.mxu0 0
    %241 = vmatpush1.bf16.msra.mxu0 0
    %242 = vmatprep.subr.bf16.mxu0 0
    %243 = vmatpush1.bf16.msra.mxu0 0
    %244 = vmatprep.mubr.bf16.mxu0 0
    %245 = vmatmul.mubr.bf16.gmra.mrb[0].mxu0 %v204
    %v246 = vpop.f32.mrb[0].mxu0
    %v247 = vadd.f32 0.0, %v246
    %v248 = vpop.f32.mrb[0].mxu0
    %v249 = vadd.f32 0.0, %v248
    %v250 = vpop.f32.mrb[0].mxu0
    %v251 = vadd.f32 0.0, %v250
    %v252 = vpop.f32.mrb[0].mxu0
    %v253 = vadd.f32 0.0, %v252
    %254 = vdwg.mxu0
    %v255 = vadd.f32 %v182, %v247
    %v256 = vadd.f32 %v184, %v249
    %v257 = vadd.f32 %v186, %v251
    %v258 = vadd.f32 %v188, %v253
    %v259 = vld [vmem:[%s6] sm:$0x3]
    %v261 = vlaneseq
    %v262 = vshrl.u32 %v261, 7
    %v263 = vsub.s32 0, %v262
    %v264 = vrot.slane %v259, %v263
    %v265 = vlaneseq
    %v266 = vshrl.u32 %v265, 7
    %v267 = vsub.s32 1, %v266
    %v268 = vrot.slane %v259, %v267
    %v271 = vadd.f32 %v255, %v264
    %v272 = vadd.f32 %v256, %v268
    %v273 = vadd.f32 %v257, %v264
    %v274 = vadd.f32 %v258, %v268
    %v275 = vmax.f32 %v271, 0.0
    %v276 = vmax.f32 %v272, 0.0
    %v277 = vmax.f32 %v273, 0.0
    %v278 = vmax.f32 %v274, 0.0
    %v279 = vpack.c.bf16 %v277, %v275
    %v280 = vpack.c.bf16 %v278, %v276
    %v281 = vld [vmem:[#allocation3] sm:$0xff]
    %v282 = vld [vmem:[#allocation3 + $0x8] sm:$0xff]
    %v283 = vld [vmem:[#allocation3 + $0x10] sm:$0xff]
    %v284 = vld [vmem:[#allocation3 + $0x18] sm:$0xff]
    %v285 = vld [vmem:[#allocation3 + $0x20] sm:$0xff]
    %v286 = vld [vmem:[#allocation3 + $0x28] sm:$0xff]
    %v287 = vld [vmem:[#allocation3 + $0x30] sm:$0xff]
    %v288 = vld [vmem:[#allocation3 + $0x38] sm:$0xff]
    %v289 = vld [vmem:[#allocation3 + $0x40] sm:$0xff]
    %v290 = vld [vmem:[#allocation3 + $0x48] sm:$0xff]
    %v291 = vld [vmem:[#allocation3 + $0x50] sm:$0xff]
    %v292 = vld [vmem:[#allocation3 + $0x58] sm:$0xff]
    %v293 = vld [vmem:[#allocation3 + $0x60] sm:$0xff]
    %v294 = vld [vmem:[#allocation3 + $0x68] sm:$0xff]
    %v295 = vld [vmem:[#allocation3 + $0x70] sm:$0xff]
    %v296 = vld [vmem:[#allocation3 + $0x78] sm:$0xff]
    %v297 = vld [vmem:[#allocation3 + $0x80] sm:$0xff]
    %v298 = vld [vmem:[#allocation3 + $0x88] sm:$0xff]
    %v299 = vld [vmem:[#allocation3 + $0x90] sm:$0xff]
    %v300 = vld [vmem:[#allocation3 + $0x98] sm:$0xff]
    %v301 = vld [vmem:[#allocation3 + $0xa0] sm:$0xff]
    %v302 = vld [vmem:[#allocation3 + $0xa8] sm:$0xff]
    %v303 = vld [vmem:[#allocation3 + $0xb0] sm:$0xff]
    %v304 = vld [vmem:[#allocation3 + $0xb8] sm:$0xff]
    %v305 = vld [vmem:[#allocation3 + $0xc0] sm:$0xff]
    %v306 = vld [vmem:[#allocation3 + $0xc8] sm:$0xff]
    %v307 = vld [vmem:[#allocation3 + $0xd0] sm:$0xff]
    %v308 = vld [vmem:[#allocation3 + $0xd8] sm:$0xff]
    %v309 = vld [vmem:[#allocation3 + $0xe0] sm:$0xff]
    %v310 = vld [vmem:[#allocation3 + $0xe8] sm:$0xff]
    %v311 = vld [vmem:[#allocation3 + $0xf0] sm:$0xff]
    %v312 = vld [vmem:[#allocation3 + $0xf8] sm:$0xff]
    %v313 = vld [vmem:[%s8] sm:$0x3]
    %v315 = vlaneseq
    %v316 = vshrl.u32 %v315, 7
    %v317 = vsub.s32 0, %v316
    %v318 = vrot.slane %v313, %v317
    %v319 = vlaneseq
    %v320 = vshrl.u32 %v319, 7
    %v321 = vsub.s32 1, %v320
    %v322 = vrot.slane %v313, %v321
    %v357 = vunpack.c.l.b16 %v281
    %v358 = vunpack.c.h.b16 %v281
    %v359 = vunpack.c.l.b16 %v282
    %v360 = vunpack.c.h.b16 %v282
    %v361 = vunpack.c.l.b16 %v283
    %v362 = vunpack.c.h.b16 %v283
    %v363 = vunpack.c.l.b16 %v284
    %v364 = vunpack.c.h.b16 %v284
    %v365 = vunpack.c.l.b16 %v285
    %v366 = vunpack.c.h.b16 %v285
    %v367 = vunpack.c.l.b16 %v286
    %v368 = vunpack.c.h.b16 %v286
    %v369 = vunpack.c.l.b16 %v287
    %v370 = vunpack.c.h.b16 %v287
    %v371 = vunpack.c.l.b16 %v288
    %v372 = vunpack.c.h.b16 %v288
    %v373 = vunpack.c.l.b16 %v289
    %v374 = vunpack.c.h.b16 %v289
    %v375 = vunpack.c.l.b16 %v290
    %v376 = vunpack.c.h.b16 %v290
    %v377 = vunpack.c.l.b16 %v291
    %v378 = vunpack.c.h.b16 %v291
    %v379 = vunpack.c.l.b16 %v292
    %v380 = vunpack.c.h.b16 %v292
    %v381 = vunpack.c.l.b16 %v293
    %v382 = vunpack.c.h.b16 %v293
    %v383 = vunpack.c.l.b16 %v294
    %v384 = vunpack.c.h.b16 %v294
    %v385 = vunpack.c.l.b16 %v295
    %v386 = vunpack.c.h.b16 %v295
    %v387 = vunpack.c.l.b16 %v296
    %v388 = vunpack.c.h.b16 %v296
    %v389 = vunpack.c.l.b16 %v297
    %v390 = vunpack.c.h.b16 %v297
    %v391 = vunpack.c.l.b16 %v298
    %v392 = vunpack.c.h.b16 %v298
    %v393 = vunpack.c.l.b16 %v299
    %v394 = vunpack.c.h.b16 %v299
    %v395 = vunpack.c.l.b16 %v300
    %v396 = vunpack.c.h.b16 %v300
    %v397 = vunpack.c.l.b16 %v301
    %v398 = vunpack.c.h.b16 %v301
    %v399 = vunpack.c.l.b16 %v302
    %v400 = vunpack.c.h.b16 %v302
    %v401 = vunpack.c.l.b16 %v303
    %v402 = vunpack.c.h.b16 %v303
    %v403 = vunpack.c.l.b16 %v304
    %v404 = vunpack.c.h.b16 %v304
    %v405 = vunpack.c.l.b16 %v305
    %v406 = vunpack.c.h.b16 %v305
    %v407 = vunpack.c.l.b16 %v306
    %v408 = vunpack.c.h.b16 %v306
    %v409 = vunpack.c.l.b16 %v307
    %v410 = vunpack.c.h.b16 %v307
    %v411 = vunpack.c.l.b16 %v308
    %v412 = vunpack.c.h.b16 %v308
    %v413 = vunpack.c.l.b16 %v309
    %v414 = vunpack.c.h.b16 %v309
    %v415 = vunpack.c.l.b16 %v310
    %v416 = vunpack.c.h.b16 %v310
    %v417 = vunpack.c.l.b16 %v311
    %v418 = vunpack.c.h.b16 %v311
    %v419 = vunpack.c.l.b16 %v312
    %v420 = vunpack.c.h.b16 %v312
    %v421 = vpack.c.b16 %v359, %v357
    %v422 = vpack.c.b16 %v360, %v358
    %v423 = vpack.c.b16 %v363, %v361
    %v424 = vpack.c.b16 %v364, %v362
    %v425 = vpack.c.b16 %v367, %v365
    %v426 = vpack.c.b16 %v368, %v366
    %v427 = vpack.c.b16 %v371, %v369
    %v428 = vpack.c.b16 %v372, %v370
    %v429 = vpack.c.b16 %v375, %v373
    %v430 = vpack.c.b16 %v376, %v374
    %v431 = vpack.c.b16 %v379, %v377
    %v432 = vpack.c.b16 %v380, %v378
    %v433 = vpack.c.b16 %v383, %v381
    %v434 = vpack.c.b16 %v384, %v382
    %v435 = vpack.c.b16 %v387, %v385
    %v436 = vpack.c.b16 %v388, %v386
    %v437 = vpack.c.b16 %v391, %v389
    %v438 = vpack.c.b16 %v392, %v390
    %v439 = vpack.c.b16 %v395, %v393
    %v440 = vpack.c.b16 %v396, %v394
    %v441 = vpack.c.b16 %v399, %v397
    %v442 = vpack.c.b16 %v400, %v398
    %v443 = vpack.c.b16 %v403, %v401
    %v444 = vpack.c.b16 %v404, %v402
    %v445 = vpack.c.b16 %v407, %v405
    %v446 = vpack.c.b16 %v408, %v406
    %v447 = vpack.c.b16 %v411, %v409
    %v448 = vpack.c.b16 %v412, %v410
    %v449 = vpack.c.b16 %v415, %v413
    %v450 = vpack.c.b16 %v416, %v414
    %v451 = vpack.c.b16 %v419, %v417
    %v452 = vpack.c.b16 %v420, %v418
    %485 = vmatprep.subr.bf16.mxu0 %v422
    %486 = vmatpush1.bf16.msra.mxu0 %v421
    %487 = vmatprep.subr.bf16.mxu0 %v424
    %488 = vmatpush1.bf16.msra.mxu0 %v423
    %489 = vmatprep.subr.bf16.mxu0 %v426
    %490 = vmatpush1.bf16.msra.mxu0 %v425
    %491 = vmatprep.subr.bf16.mxu0 %v428
    %492 = vmatpush1.bf16.msra.mxu0 %v427
    %493 = vmatprep.subr.bf16.mxu0 %v430
    %494 = vmatpush1.bf16.msra.mxu0 %v429
    %495 = vmatprep.subr.bf16.mxu0 %v432
    %496 = vmatpush1.bf16.msra.mxu0 %v431
    %497 = vmatprep.subr.bf16.mxu0 %v434
    %498 = vmatpush1.bf16.msra.mxu0 %v433
    %499 = vmatprep.subr.bf16.mxu0 %v436
    %500 = vmatpush1.bf16.msra.mxu0 %v435
    %501 = vmatprep.subr.bf16.mxu0 %v438
    %502 = vmatpush1.bf16.msra.mxu0 %v437
    %503 = vmatprep.subr.bf16.mxu0 %v440
    %504 = vmatpush1.bf16.msra.mxu0 %v439
    %505 = vmatprep.subr.bf16.mxu0 %v442
    %506 = vmatpush1.bf16.msra.mxu0 %v441
    %507 = vmatprep.subr.bf16.mxu0 %v444
    %508 = vmatpush1.bf16.msra.mxu0 %v443
    %509 = vmatprep.subr.bf16.mxu0 %v446
    %510 = vmatpush1.bf16.msra.mxu0 %v445
    %511 = vmatprep.subr.bf16.mxu0 %v448
    %512 = vmatpush1.bf16.msra.mxu0 %v447
    %513 = vmatprep.subr.bf16.mxu0 %v450
    %514 = vmatpush1.bf16.msra.mxu0 %v449
    %515 = vmatprep.subr.bf16.mxu0 %v452
    %516 = vmatpush1.bf16.msra.mxu0 %v451
    %517 = vmatprep.mubr.bf16.mxu0 %v280
    %518 = vmatmul.mubr.bf16.gmra.mrb[0].mxu0 %v279
    %v519 = vpop.f32.mrb[0].mxu0
    %v520 = vadd.f32 %v318, %v519
    %v521 = vpop.f32.mrb[0].mxu0
    %v522 = vadd.f32 %v322, %v521
    %v523 = vpop.f32.mrb[0].mxu0
    %v524 = vadd.f32 %v318, %v523
    %v525 = vpop.f32.mrb[0].mxu0
    %v526 = vadd.f32 %v322, %v525
    %527 = vdwg.mxu0
    %v528 = vmax.f32 %v520, 0.0
    %v529 = vmax.f32 %v522, 0.0
    %v530 = vmax.f32 %v524, 0.0
    %v531 = vmax.f32 %v526, 0.0
    %v532 = vpack.c.bf16 %v530, %v528
    %v533 = vpack.c.bf16 %v531, %v529
    %v534 = vld [vmem:[%s9] sm:$0x3]
    %v535 = vld [vmem:[#allocation2] sm:$0x1]
    %537 = vset.pattern.permute.xlu0 0
    %538 = vperm.xlu0 %537, %v535
    %v539 = vpop.permute.xlu0 %538
    %v541 = vlaneseq
    %v542 = vshrl.u32 %v541, 7
    %v543 = vsub.s32 0, %v542
    %v544 = vrot.slane %v539, %v543
    %v547 = vunpack.c.l.s4 1966171168
    %v548 = vunpack.c.0.s8 %v547
    %v549 = vlaneseq
    %v550 = vshrl.u32 %v549, 7
    %v551 = vsub.s32 %v548, %v550
    %v552 = vrot.slane %v534, %v551
    %v553 = vcombine.high %v552, %v552
    %v555 = vunpack.c.l.s4 1966171168
    %v556 = vunpack.c.0.s8 %v555
    %v557 = vlaneseq
    %v558 = vshrl.u32 %v557, 7
    %v559 = vsub.s32 %v556, %v558
    %v560 = vrot.slane %v552, %v559
    %v562 = vunpack.c.l.s4 1966171168
    %v563 = vunpack.c.0.s8 %v562
    %v564 = vlaneseq
    %v565 = vshrl.u32 %v564, 7
    %v566 = vsub.s32 %v563, %v565
    %v567 = vrot.slane %v553, %v566
    %570 = vmatprep.subr.bf16.mxu0 %v533
    %571 = vmatpush1.bf16.xpose.msra.mxu0 %v532
    %572 = vmatprep.subr.bf16.mxu0 0
    %573 = vmatpush1.bf16.xpose.msra.mxu0 0
    %574 = vmatprep.subr.bf16.mxu0 0
    %575 = vmatpush1.bf16.xpose.msra.mxu0 0
    %576 = vmatprep.subr.bf16.mxu0 0
    %577 = vmatpush1.bf16.xpose.msra.mxu0 0
    %578 = vmatprep.subr.bf16.mxu0 0
    %579 = vmatpush1.bf16.xpose.msra.mxu0 0
    %580 = vmatprep.subr.bf16.mxu0 0
    %581 = vmatpush1.bf16.xpose.msra.mxu0 0
    %582 = vmatprep.subr.bf16.mxu0 0
    %583 = vmatpush1.bf16.xpose.msra.mxu0 0
    %584 = vmatprep.subr.bf16.mxu0 0
    %585 = vmatpush1.bf16.xpose.msra.mxu0 0
    %586 = vmatprep.subr.bf16.mxu0 0
    %587 = vmatpush1.bf16.xpose.msra.mxu0 0
    %588 = vmatprep.subr.bf16.mxu0 0
    %589 = vmatpush1.bf16.xpose.msra.mxu0 0
    %590 = vmatprep.subr.bf16.mxu0 0
    %591 = vmatpush1.bf16.xpose.msra.mxu0 0
    %592 = vmatprep.subr.bf16.mxu0 0
    %593 = vmatpush1.bf16.xpose.msra.mxu0 0
    %594 = vmatprep.subr.bf16.mxu0 0
    %595 = vmatpush1.bf16.xpose.msra.mxu0 0
    %596 = vmatprep.subr.bf16.mxu0 0
    %597 = vmatpush1.bf16.xpose.msra.mxu0 0
    %598 = vmatprep.subr.bf16.mxu0 0
    %599 = vmatpush1.bf16.xpose.msra.mxu0 0
    %600 = vmatprep.subr.bf16.mxu0 0
    %601 = vmatpush1.bf16.xpose.msra.mxu0 0
    %602 = vmatprep.mubr.bf16.mxu0 %v567
    %603 = vmatmul.mubr.bf16.gmra.mrb[0].mxu0 %v560
    %v604 = vpop.f32.mrb[0].mxu0
    %v605 = vadd.f32 %v544, %v604
    %v606 = vpop.f32.mrb[0].mxu0
    %v607 = vpop.f32.mrb[0].mxu0
    %v608 = vpop.f32.mrb[0].mxu0
    %609 = vdwg.mxu0
    %v610 = vxor.u32 %v605, 2147483648
    %v611 = vmul.f32 %v610, 1.442695
    %v612 = vpow.pop %v611
    %v613 = vadd.f32 %v612, 1.0
    %v614 = vrcp.pop %v613
    %v615 = vmul.f32 1.0, %v614
    %v616 = vmax.f32 %v615, 0.1
    %v617 = vmin.f32 %v616, 0.9
    %vm618 = vcmask 122880
    %619 = vst.msk [vmem:[#allocation6] sm:$0x1] %vm618, %v617
    // Predicated region
    $region50: #{tpu_custom_call.1} parent=1 // pred_check
      _
    $region51: #{tpu_custom_call.1} parent=1 // pred_check_branch
      %621 = sbr.rel (0) target = $region53
    $region52: #{tpu_custom_call.1} parent=1 // pred_region
      %s623 = ssub.s32 16, 16
      %624 = vsyncadd [#allocation5], %s623
      %s626 = sshll.u32 [#allocation6], 4
      %s627 = int_to_ptr.vmem [resolvable:$true] %s626
      %629 = dma.vmem_to_hbm [thread:$0]  %s627, 16, %s11, [#allocation5]
    $region53: #{tpu_custom_call.1} parent=1 // pred_fallthru
      _
    // Predicated region
    $region54: #{tpu_custom_call.1} parent=1 // pred_check
      _
    $region55: #{tpu_custom_call.1} parent=1 // pred_check_branch
      %631 = sbr.rel (0) target = $region57
    $region56: #{tpu_custom_call.1} parent=1 // pred_region
      %632 = dma.done [#allocation5], 16
    $region57: #{tpu_custom_call.1} parent=1 // pred_fallthru
      _
    %633 = vsyncpa [#allocation4], 1
    %634 = vsyncpa [#allocation5], 1

</llo_original>
